<compile_context>
chip_gen: v6e
topology: v6e:2x2x1
jax: 0.10.0
libtpu: 0.0.40
codegen_flags: <defaults>
</compile_context>

<pallas_src>
import jax
import jax.numpy as jnp
from jax.experimental import pallas as pl
from jax.experimental.pallas import tpu as pltpu

_MAX_BLOCK_ROWS = 256          # row tile cap (multiple of 8), v7x-safe
_MAX_BLOCK_COLS = 512          # output-feature tile cap (multiple of 128)
_VMEM_BUDGET = 40 * 1024 * 1024  # keep comfortably under v7x's 64 MiB VMEM


def _sig_linear_kernel(x_ref, w_ref, b_ref, o_ref):
    """o = sigmoid(x @ w.T + b) for one (tm, tn) output tile."""
    # x_ref: (tm, K) streamed rows; w_ref: (tn, K) weight tile in native
    # PyTorch layout; contract K on both sides (no transpose anywhere).
    # DEFAULT precision = single MXU pass; accumulate in f32.
    z = jax.lax.dot_general(
        x_ref[...],
        w_ref[...],
        dimension_numbers=(((1,), (1,)), ((), ())),
        preferred_element_type=jnp.float32,
    )
    z = z + b_ref[...].astype(jnp.float32)
    # sigmoid(z) = 0.5 * tanh(z / 2) + 0.5 : one EUP op, no f32 divide.
    o_ref[...] = (0.5 * jnp.tanh(0.5 * z) + 0.5).astype(o_ref.dtype)


def _choose_tiles(m, n, k, x_itemsize, w_itemsize, o_itemsize):
    """Pick (tm, tn) tiles and estimate the double-buffered VMEM footprint."""
    tm = m if m <= _MAX_BLOCK_ROWS else _MAX_BLOCK_ROWS
    tn = n if n <= _MAX_BLOCK_COLS else _MAX_BLOCK_COLS

    def vmem_estimate(tm_, tn_):
        # All operands double-buffered by the auto-pipeliner; the (1, tn)
        # bias block is sublane-padded to 8 rows in VMEM.
        return 2 * (tm_ * k * x_itemsize
                    + tn_ * k * w_itemsize
                    + 8 * tn_ * 4
                    + tm_ * tn_ * o_itemsize)

    # Shrink tiles (preserving (8, 128) alignment) if the footprint would not
    # fit the v7x VMEM budget (only triggers for very large in_dim).
    while vmem_estimate(tm, tn) > _VMEM_BUDGET:
        if tm > 64:
            tm = max(8, (tm // 2) // 8 * 8)
        elif tn > 128:
            tn = max(128, (tn // 2) // 128 * 128)
        else:
            break
    return tm, tn, vmem_estimate(tm, tn)


def sig_linear(x, weight, bias):
    """Pallas equivalent of torch.sigmoid(nn.Linear(in_dim, out_dim)(x)).

    x:      (..., K)  any leading dims, native dtype kept at the HBM boundary
    weight: (N, K)    native PyTorch nn.Linear layout (NOT transposed here)
    bias:   (N,)
    """
    orig_shape = x.shape
    K = orig_shape[-1]
    N, Kw = weight.shape
    assert Kw == K, "weight must be (out_dim, in_dim)"
    assert bias.shape == (N,), "bias must be (out_dim,)"

    x2d = x.reshape(-1, K)            # collapse leading dims (no data movement)
    M = x2d.shape[0]
    b2d = bias.reshape(1, N)
    out_dtype = x.dtype

    tm, tn, vmem_needed = _choose_tiles(
        M, N, K,
        x2d.dtype.itemsize, weight.dtype.itemsize, jnp.dtype(out_dtype).itemsize)

    grid = (pl.cdiv(M, tm), pl.cdiv(N, tn))

    # Explicit VMEM limit with headroom: covers v5e's 16 MiB default scoped
    # limit and stays inside v7x's 64 MiB physical VMEM.
    vmem_limit = min(max(int(vmem_needed * 1.5) + (4 << 20), 32 << 20), 96 << 20)

    out2d = pl.pallas_call(
        _sig_linear_kernel,
        out_shape=jax.ShapeDtypeStruct((M, N), out_dtype),
        grid_spec=pltpu.PrefetchScalarGridSpec(
            num_scalar_prefetch=0,
            grid=grid,
            in_specs=[
                pl.BlockSpec((tm, K), lambda i, j: (i, 0)),   # x rows (streamed)
                pl.BlockSpec((tn, K), lambda i, j: (j, 0)),   # weight tile (N,K layout)
                pl.BlockSpec((1, tn), lambda i, j: (0, j)),   # bias tile
            ],
            out_specs=pl.BlockSpec((tm, tn), lambda i, j: (i, j)),
        ),
        compiler_params=pltpu.CompilerParams(
            # Every (i, j) writes an independent output tile -> both axes are
            # shardable across v7x's two TensorCores (no-op on v5e/v6e).
            dimension_semantics=("parallel", "parallel"),
            vmem_limit_bytes=vmem_limit,
        ),
    )(x2d, weight, b2d)

    return out2d.reshape(orig_shape[:-1] + (N,))


def _reference(x, weight, bias):
    z = jnp.einsum("...k,nk->...n", x, weight) + bias
    return jax.nn.sigmoid(z)


if __name__ == "__main__":
    key = jax.random.PRNGKey(0)
    kx, kw, kb = jax.random.split(key, 3)

    # Small demo shapes consistent with the module: batch=2, seq=8, in_dim=32.
    in_dim = 32
    x = jax.random.normal(kx, (2, 8, in_dim), jnp.float32)

    # nn.Linear-style init: U(-1/sqrt(in_dim), 1/sqrt(in_dim)), deterministic.
    bound = 1.0 / float(in_dim) ** 0.5
    weight = jax.random.uniform(
        kw, (in_dim, in_dim), jnp.float32, minval=-bound, maxval=bound)
    bias = jax.random.uniform(
        kb, (in_dim,), jnp.float32, minval=-bound, maxval=bound)

    out = jax.block_until_ready(sig_linear(x, weight, bias))

    ref = _reference(x, weight, bias)
    assert out.shape == ref.shape
    # Tolerance accounts for single-pass (bf16) MXU accumulation vs. the f32
    # XLA reference; error is bounded further by the sigmoid's <=0.25 slope.
    assert jnp.allclose(out, ref, atol=5e-3, rtol=5e-3), (
        f"mismatch vs reference: max abs err {jnp.max(jnp.abs(out - ref))}")
    print("KERNEL_OK")
</pallas_src>

<mosaic_0001>
module attributes {stable_mosaic.version = 11 : i64} {
  func.func @_sig_linear_kernel(%arg0: i32, %arg1: i32, %arg2: memref<16x32xf32, #tpu.memory_space<vmem>>, %arg3: memref<32x32xf32, #tpu.memory_space<vmem>>, %arg4: memref<1x32xf32, #tpu.memory_space<vmem>>, %arg5: memref<16x32xf32, #tpu.memory_space<vmem>>) attributes {dimension_semantics = [#tpu.dimension_semantics<parallel>, #tpu.dimension_semantics<parallel>], iteration_bounds = array<i64: 1, 1>, scalar_prefetch = 0 : i64, scratch_operands = 0 : i64, tpu.core_type = #tpu.core_type<tc>, window_params = [{transform_indices = @transform_0, window_bounds = array<i64: 16, 32>}, {transform_indices = @transform_1, window_bounds = array<i64: 32, 32>}, {transform_indices = @transform_2, window_bounds = array<i64: 1, 32>}, {transform_indices = @transform_3, window_bounds = array<i64: 16, 32>}]} {
    %c0 = arith.constant 0 : index
    %c0_0 = arith.constant 0 : index
    %0 = vector.load %arg2[%c0, %c0_0] : memref<16x32xf32, #tpu.memory_space<vmem>>, vector<16x32xf32>
    %c0_1 = arith.constant 0 : index
    %c0_2 = arith.constant 0 : index
    %1 = vector.load %arg3[%c0_1, %c0_2] : memref<32x32xf32, #tpu.memory_space<vmem>>, vector<32x32xf32>
    %cst = arith.constant dense<0.000000e+00> : vector<16x32xf32>
    %2 = tpu.matmul %0, %1, %cst {dimension_numbers = #tpu.dot_dimension_numbers<[1], [1], [0], [0], [0, 0, 1, 0], [], []>} : vector<16x32xf32>, vector<32x32xf32>, vector<16x32xf32> -> vector<16x32xf32>
    %c0_3 = arith.constant 0 : index
    %c0_4 = arith.constant 0 : index
    %3 = vector.load %arg4[%c0_3, %c0_4] : memref<1x32xf32, #tpu.memory_space<vmem>>, vector<1x32xf32>
    %4 = vector.broadcast %3 : vector<1x32xf32> to vector<16x32xf32>
    %5 = arith.addf %2, %4 : vector<16x32xf32>
    %cst_5 = arith.constant 5.000000e-01 : f32
    %6 = vector.broadcast %cst_5 : f32 to vector<16x32xf32>
    %7 = arith.mulf %6, %5 : vector<16x32xf32>
    %8 = math.tanh %7 : vector<16x32xf32>
    %cst_6 = arith.constant 5.000000e-01 : f32
    %9 = vector.broadcast %cst_6 : f32 to vector<16x32xf32>
    %10 = arith.mulf %9, %8 : vector<16x32xf32>
    %cst_7 = arith.constant 5.000000e-01 : f32
    %11 = vector.broadcast %cst_7 : f32 to vector<16x32xf32>
    %12 = arith.addf %10, %11 : vector<16x32xf32>
    %c0_8 = arith.constant 0 : index
    %c0_9 = arith.constant 0 : index
    %13 = vector.load %arg5[%c0_8, %c0_9] : memref<16x32xf32, #tpu.memory_space<vmem>>, vector<16x32xf32>
    tpu.vector_store %arg5[%c0_8, %c0_9], %12 {strides = array<i32>} : memref<16x32xf32, #tpu.memory_space<vmem>>, vector<16x32xf32>,
    return
  }
  func.func @transform_0(%arg0: i32, %arg1: i32) -> (i32, i32) {
    %c0_i32 = arith.constant 0 : i32
    %c0_i32_0 = arith.constant 0 : i32
    return %arg0, %c0_i32 : i32, i32
  }
  func.func @transform_1(%arg0: i32, %arg1: i32) -> (i32, i32) {
    %c0_i32 = arith.constant 0 : i32
    %c0_i32_0 = arith.constant 0 : i32
    return %arg1, %c0_i32 : i32, i32
  }
  func.func @transform_2(%arg0: i32, %arg1: i32) -> (i32, i32) {
    %c0_i32 = arith.constant 0 : i32
    %c0_i32_0 = arith.constant 0 : i32
    return %c0_i32, %arg1 : i32, i32
  }
  func.func @transform_3(%arg0: i32, %arg1: i32) -> (i32, i32) {
    %c0_i32 = arith.constant 0 : i32
    return %arg0, %arg1 : i32, i32
  }
}

</mosaic_0001>

<llo_original>
// kernel: tpu_custom_call.1
$region0: #{tpu_custom_call.1}
  #allocation0 [shape = 'u32[]', space=smem, size = 0x4, offset = 0x4, fixed_abs, tag = 'smem constant byte address 0x4 - core index']
  #allocation1 [shape = 'u32[144,128]{1,0:T(1,128)}', space=vmem, size = 0x12000, scoped, tag = 'internal scratch']
  %s0 = inlined_call_operand.hbm [shape: f32[16,32], index: 0, kind: input, shape index: {}]
  %s1 = inlined_call_operand.hbm [shape: f32[32,32], index: 1, kind: input, shape index: {}]
  %s2 = inlined_call_operand.vmem [shape: f32[1,32], index: 2, kind: input, shape index: {}]
  %s3 = inlined_call_operand.hbm [shape: f32[16,32], index: 3, kind: output, shape index: {}]
  %s4 = sld [smem:[#allocation0]]
  $region30: #{tpu_custom_call.1} parent=0
    _
  %s6 = ssub.s32 1, %s4
  %s7 = scalar_select 0, %s6, %s4
  $region1: #{tpu_custom_call.1} parent=0
    #allocation2 [shape = 'u8[8192]{0}', space=vmem, size = 0x2000, scoped, tag = 'input window, operand 0, single buffered']
    #allocation3 [shape = 's32[1]{0}', space=sflag, size = 0x4, scoped, tag = 'scoped memory for tpu_custom_call.1']
    #allocation4 [shape = 's32[1]{0}', space=sflag, size = 0x4, scoped, tag = 'scoped memory for tpu_custom_call.1']
    #allocation5 [shape = 'u8[16384]{0}', space=vmem, size = 0x4000, scoped, tag = 'input window, operand 1, single buffered']
    #allocation6 [shape = 's32[1]{0}', space=sflag, size = 0x4, scoped, tag = 'scoped memory for tpu_custom_call.1']
    #allocation7 [shape = 'u8[8192]{0}', space=vmem, size = 0x2000, scoped, tag = 'output window, operand 0, single buffered']
    %8 = vsyncpa [#allocation3], 0
    %9 = vsyncpa [#allocation6], 0
    %10 = vsyncpa [#allocation4], 0
    // Predicated region
    $region2: #{tpu_custom_call.1} parent=1 // pred_check
      _
    $region3: #{tpu_custom_call.1} parent=1 // pred_check_branch
      %12 = sbr.rel (0) target = $region5
    $region4: #{tpu_custom_call.1} parent=1 // pred_region
      %s14 = ssub.s32 256, 256
      %15 = vsyncadd [#allocation3], %s14
      %s16 = sshll.u32 [#allocation2], 4
      %s17 = int_to_ptr.vmem [resolvable:$true] %s16
      %22 = dma.hbm_to_vmem [thread:$0]  %s0, 256, %s17, [#allocation3], 128, 128, 8
    $region5: #{tpu_custom_call.1} parent=1 // pred_fallthru
      _
    // Predicated region
    $region6: #{tpu_custom_call.1} parent=1 // pred_check
      _
    $region7: #{tpu_custom_call.1} parent=1 // pred_check_branch
      %24 = sbr.rel (0) target = $region9
    $region8: #{tpu_custom_call.1} parent=1 // pred_region
      %s26 = ssub.s32 512, 512
      %27 = vsyncadd [#allocation6], %s26
      %s28 = sshll.u32 [#allocation5], 4
      %s29 = int_to_ptr.vmem [resolvable:$true] %s28
      %34 = dma.hbm_to_vmem [thread:$0]  %s1, 512, %s29, [#allocation6], 128, 128, 8
    $region9: #{tpu_custom_call.1} parent=1 // pred_fallthru
      _
    // Predicated region
    $region10: #{tpu_custom_call.1} parent=1 // pred_check
      _
    $region11: #{tpu_custom_call.1} parent=1 // pred_check_branch
      %36 = sbr.rel (0) target = $region13
    $region12: #{tpu_custom_call.1} parent=1 // pred_region
      _
    $region13: #{tpu_custom_call.1} parent=1 // pred_fallthru
      _
    // Predicated region
    $region14: #{tpu_custom_call.1} parent=1 // pred_check
      _
    $region15: #{tpu_custom_call.1} parent=1 // pred_check_branch
      %38 = sbr.rel (0) target = $region17
    $region16: #{tpu_custom_call.1} parent=1 // pred_region
      %39 = dma.done [#allocation3], 256
    $region17: #{tpu_custom_call.1} parent=1 // pred_fallthru
      _
    // Predicated region
    $region18: #{tpu_custom_call.1} parent=1 // pred_check
      _
    $region19: #{tpu_custom_call.1} parent=1 // pred_check_branch
      %41 = sbr.rel (0) target = $region21
    $region20: #{tpu_custom_call.1} parent=1 // pred_region
      %42 = dma.done [#allocation6], 512
    $region21: #{tpu_custom_call.1} parent=1 // pred_fallthru
      _
    %v43 = vld [vmem:[#allocation2] sm:$0xff]
    %v44 = vld [vmem:[#allocation2 + $0x8] sm:$0xff]
    %v45 = vld [vmem:[#allocation5] sm:$0xff]
    %v46 = vld [vmem:[#allocation5 + $0x8] sm:$0xff]
    %v47 = vld [vmem:[#allocation5 + $0x10] sm:$0xff]
    %v48 = vld [vmem:[#allocation5 + $0x18] sm:$0xff]
    %v49 = vld [vmem:[%s2] sm:$0x1]
    %v51 = vlaneseq
    %v52 = vshrl.u32 %v51, 7
    %v53 = vsub.s32 0, %v52
    %v54 = vrot.slane %v49, %v53
    %vm56 = vcmask 261120
    %v58 = vsel %vm56, %v43, 0
    %v61 = vsel %vm56, %v44, 0
    %v64 = vsel %vm56, %v45, 0
    %v67 = vsel %vm56, %v46, 0
    %v70 = vsel %vm56, %v47, 0
    %v73 = vsel %vm56, %v48, 0
    %75 = vmatprep.subr.mxu0 0.0
    %76 = vmatpush1.xpose.msra.mxu0 0.0
    %77 = vmatprep.subr.mxu0 0.0
    %78 = vmatpush1.xpose.msra.mxu0 0.0
    %79 = vmatprep.subr.mxu0 0.0
    %80 = vmatpush1.xpose.msra.mxu0 0.0
    %81 = vmatprep.subr.mxu0 0.0
    %82 = vmatpush1.xpose.msra.mxu0 0.0
    %83 = vmatprep.subr.mxu0 0.0
    %84 = vmatpush1.xpose.msra.mxu0 0.0
    %85 = vmatprep.subr.mxu0 0.0
    %86 = vmatpush1.xpose.msra.mxu0 0.0
    %87 = vmatprep.subr.mxu0 0.0
    %88 = vmatpush1.xpose.msra.mxu0 0.0
    %89 = vmatprep.subr.mxu0 0.0
    %90 = vmatpush1.xpose.msra.mxu0 0.0
    %91 = vmatprep.subr.mxu0 0.0
    %92 = vmatpush1.xpose.msra.mxu0 0.0
    %93 = vmatprep.subr.mxu0 0.0
    %94 = vmatpush1.xpose.msra.mxu0 0.0
    %95 = vmatprep.subr.mxu0 0.0
    %96 = vmatpush1.xpose.msra.mxu0 0.0
    %97 = vmatprep.subr.mxu0 0.0
    %98 = vmatpush1.xpose.msra.mxu0 0.0
    %99 = vmatprep.subr.mxu0 0.0
    %100 = vmatpush1.xpose.msra.mxu0 %v73
    %101 = vmatprep.subr.mxu0 0.0
    %102 = vmatpush1.xpose.msra.mxu0 %v70
    %103 = vmatprep.subr.mxu0 0.0
    %104 = vmatpush1.xpose.msra.mxu0 %v67
    %105 = vmatprep.subr.mxu0 0.0
    %106 = vmatpush1.xpose.msra.mxu0 %v64
    %107 = vmatprep.subr.mxu0 0.0
    %108 = vmatpush2.xpose.msra.mxu0 0.0
    %109 = vmatprep.subr.mxu0 0.0
    %110 = vmatpush2.xpose.msra.mxu0 0.0
    %111 = vmatprep.subr.mxu0 0.0
    %112 = vmatpush2.xpose.msra.mxu0 0.0
    %113 = vmatprep.subr.mxu0 0.0
    %114 = vmatpush2.xpose.msra.mxu0 0.0
    %115 = vmatprep.subr.mxu0 0.0
    %116 = vmatpush2.xpose.msra.mxu0 0.0
    %117 = vmatprep.subr.mxu0 0.0
    %118 = vmatpush2.xpose.msra.mxu0 0.0
    %119 = vmatprep.subr.mxu0 0.0
    %120 = vmatpush2.xpose.msra.mxu0 0.0
    %121 = vmatprep.subr.mxu0 0.0
    %122 = vmatpush2.xpose.msra.mxu0 0.0
    %123 = vmatprep.subr.mxu0 0.0
    %124 = vmatpush2.xpose.msra.mxu0 0.0
    %125 = vmatprep.subr.mxu0 0.0
    %126 = vmatpush2.xpose.msra.mxu0 0.0
    %127 = vmatprep.subr.mxu0 0.0
    %128 = vmatpush2.xpose.msra.mxu0 0.0
    %129 = vmatprep.subr.mxu0 0.0
    %130 = vmatpush2.xpose.msra.mxu0 0.0
    %131 = vmatprep.subr.mxu0 0.0
    %132 = vmatpush2.xpose.msra.mxu0 0.0
    %133 = vmatprep.subr.mxu0 0.0
    %134 = vmatpush2.xpose.msra.mxu0 0.0
    %135 = vmatprep.subr.mxu0 0.0
    %136 = vmatpush2.xpose.msra.mxu0 0.0
    %137 = vmatprep.subr.mxu0 0.0
    %138 = vmatpush2.xpose.msra.mxu0 0.0
    %139 = vmatprep.mubr.f32.mxu0 0.0
    %140 = vmatmul.mubr.f32.gmra.mxu0 %v58
    %v141 = vpop.f32.mrf.mxu0
    %v142 = vadd.f32 %v54, %v141
    %v143 = vpop.f32.mrf.mxu0
    %144 = vmatprep.mubr.f32.mxu0 0.0
    %145 = vmatmul.mubr.f32.gmra.mxu0 %v61
    %v146 = vpop.f32.mrf.mxu0
    %v147 = vadd.f32 %v54, %v146
    %v148 = vpop.f32.mrf.mxu0
    %149 = vdwg.mxu0
    %v150 = vmul.f32 %v142, 0.5
    %v151 = vmul.f32 %v147, 0.5
    %v152 = vtanh.pop %v150
    %v153 = vtanh.pop %v151
    %v154 = vmul.f32 %v152, 0.5
    %v155 = vmul.f32 %v153, 0.5
    %v156 = vadd.f32 %v154, 0.5
    %v157 = vadd.f32 %v155, 0.5
    %158 = vst.msk [vmem:[#allocation7] sm:$0xff] %vm56, %v156
    %159 = vst.msk [vmem:[#allocation7 + $0x8] sm:$0xff] %vm56, %v157
    // Predicated region
    $region22: #{tpu_custom_call.1} parent=1 // pred_check
      _
    $region23: #{tpu_custom_call.1} parent=1 // pred_check_branch
      %161 = sbr.rel (0) target = $region25
    $region24: #{tpu_custom_call.1} parent=1 // pred_region
      %s163 = ssub.s32 256, 256
      %164 = vsyncadd [#allocation4], %s163
      %s165 = sshll.u32 [#allocation7], 4
      %s166 = int_to_ptr.vmem [resolvable:$true] %s165
      %171 = dma.vmem_to_hbm [thread:$0]  %s166, 256, %s3, [#allocation4], 128, 128, 8
    $region25: #{tpu_custom_call.1} parent=1 // pred_fallthru
      _
    // Predicated region
    $region26: #{tpu_custom_call.1} parent=1 // pred_check
      _
    $region27: #{tpu_custom_call.1} parent=1 // pred_check_branch
      %173 = sbr.rel (0) target = $region29
    $region28: #{tpu_custom_call.1} parent=1 // pred_region
      %174 = dma.done [#allocation4], 256
    $region29: #{tpu_custom_call.1} parent=1 // pred_fallthru
      _
    %175 = vsyncpa [#allocation3], 1
    %176 = vsyncpa [#allocation6], 1
    %177 = vsyncpa [#allocation4], 1

</llo_original>
